<compile_context>
chip_gen: v5e
topology: v5e:2x2
jax: 0.10.0
libtpu: 0.0.40
codegen_flags: <defaults>
</compile_context>

<pallas_src>
import functools

import jax
import jax.numpy as jnp
from jax.experimental import pallas as pl
from jax.experimental.pallas import tpu as pltpu


# ----------------------------------------------------------------------------
# Kernel
# ----------------------------------------------------------------------------
def fused_kernel(x_ref, mask_ref, w_ref, o_ref, *, wp, cmid):
    """Whole module on one (cp, L) activation slab.

    x_ref   : (cp, L)  f32  halo-ring-padded, lane-padded (optionally batch-
                            folded) flattened activations; ring/pad lanes are 0.
    mask_ref: (1, L)   f32  1 at interior pixels, 0 at halo ring / pad lanes.
    w_ref   : (2*cmid + cout, 9*cp + 1) f32 packed BN-folded im2col weights,
              bias in the last column (row blocks: conv1 | conv2 | conv3).
    o_ref   : (cout, L) f32  only interior lanes are valid (cropped by wrapper).
    """
    cp, L = x_ref.shape
    cout = o_ref.shape[0]
    mask = mask_ref[...]                               # (1, L)
    ones = jnp.ones((1, L), jnp.float32)               # bias row for im2col matmul

    def conv_bn_lrelu(act, w_mat):
        # 3x3 'same' conv = im2col via 9 static lane rotations (XLU, aligned
        # because L is a 128 multiple) stacked into full 8-sublane tiles, then
        # ONE MXU matmul with bias folded in as an extra K row.
        taps = []
        for dy in range(3):
            for dx in range(3):
                s = (dy - 1) * wp + (dx - 1)           # static flat tap offset
                taps.append(act if s == 0
                            else pltpu.roll(act, (-s) % L, axis=1))
        cols = jnp.concatenate(taps + [ones], axis=0)  # (9*cp + 1, L)
        y = jnp.dot(w_mat, cols, preferred_element_type=jnp.float32)
        return jnp.maximum(y, 0.1 * y)                 # LeakyReLU(0.1)

    x = x_ref[...]                                                  # (cp, L)
    out1 = conv_bn_lrelu(x, w_ref[0:cmid, :]) * mask                # re-zero halo
    f1 = conv_bn_lrelu(out1, w_ref[cmid:2 * cmid, :])
    out2 = out1 * (1.0 + jax.nn.sigmoid(f1))                        # halo stays 0
    o_ref[...] = conv_bn_lrelu(out2, w_ref[2 * cmid:2 * cmid + cout, :]
                               ).astype(o_ref.dtype)


# ----------------------------------------------------------------------------
# Wrapper
# ----------------------------------------------------------------------------
def _round_up(n, m):
    return -(-n // m) * m


def _fold_bn_im2col(w_hwio, scale, bias, cin_pad, cout_pad):
    """BN-folded, channel-padded, im2col-ordered weights; bias as last column."""
    kh, kw, ci, co = w_hwio.shape
    w = jnp.zeros((kh, kw, cin_pad, cout_pad), jnp.float32)
    w = w.at[:, :, :ci, :co].set(w_hwio * scale)              # fold BN scale
    w_mat = jnp.transpose(w, (3, 0, 1, 2)).reshape(cout_pad, kh * kw * cin_pad)
    b_col = jnp.zeros((cout_pad, 1), jnp.float32).at[:co, 0].set(bias)
    return jnp.concatenate([w_mat, b_col], axis=1)            # (cout_pad, 9*cin_pad+1)


def _batch_on_grid_default():
    """Keep one image per grid step only on multi-TensorCore chips (v7x)."""
    try:
        kind = jax.devices()[0].device_kind.lower()
    except Exception:
        return False
    return ("v7" in kind) or ("7x" in kind)


@functools.partial(jax.jit, static_argnames=("batch_on_grid",))
def _forward(x, params, batch_on_grid):
    B, cin, H, W = x.shape
    hp, wp = H + 2, W + 2
    np_valid = hp * wp                       # 18*18 = 324
    lp = _round_up(np_valid, 128)            # 384: unmasked stores, aligned rolls
    cp = _round_up(cin, 8)                   # 8: full-sublane im2col taps

    cmid = params["conv1"][0].shape[-1]
    cout = params["conv3"][0].shape[-1]
    cmp_ = _round_up(cmid, 8)
    coutp = _round_up(cout, 8)
    assert cp == cmp_, "module keeps channel count through conv1/conv2"

    # One packed weight input (rows: conv1 | conv2 | conv3) instead of six.
    w_all = jnp.concatenate([
        _fold_bn_im2col(*params["conv1"], cp, cmp_),
        _fold_bn_im2col(*params["conv2"], cmp_, cmp_),
        _fold_bn_im2col(*params["conv3"], cmp_, coutp),
    ], axis=0)                                               # (2*cmp_+coutp, 9*cp+1)

    # Channel-major, halo-padded, lane-padded, batch-folded activation slab.
    xp = jnp.pad(x, ((0, 0), (0, cp - cin), (1, 1), (1, 1)))          # (B,cp,hp,wp)
    xp = jnp.pad(xp.reshape(B, cp, np_valid),
                 ((0, 0), (0, 0), (0, lp - np_valid)))                # (B,cp,lp)
    xp = jnp.transpose(xp, (1, 0, 2)).reshape(cp, B * lp)             # (cp, B*lp)

    # Interior mask (1 inside HxW, 0 on halo ring and lane-padding tail).
    m = (jnp.zeros((hp, wp), jnp.float32).at[1:H + 1, 1:W + 1].set(1.0)
         .reshape(np_valid))
    mask = jnp.tile(jnp.pad(m, (0, lp - np_valid)), B).reshape(1, B * lp)

    if batch_on_grid:
        # v7x: 2 TensorCores -> one image per (parallel) grid step.
        # TODO(synk): verify the 2-TC split in a profile; switch to CORE_PARALLEL
        # / core_map if the plain parallel axis is not sharded across cores.
        grid, L = (B,), lp
        lane_map = lambda b: (0, b)
    else:
        # Single-TC chips (v5e/v6e): whole batch in one grid step (wider lanes,
        # no extra grid-step / DMA-setup overhead).
        grid, L = (1,), B * lp
        lane_map = lambda b: (0, 0)

    kernel = functools.partial(fused_kernel, wp=wp, cmid=cmp_)
    out = pl.pallas_call(
        kernel,
        grid=grid,
        in_specs=[
            pl.BlockSpec((cp, L), lane_map),                  # activations
            pl.BlockSpec((1, L), lane_map),                   # interior mask
            pl.BlockSpec(w_all.shape, lambda b: (0, 0)),      # packed weights
        ],
        out_specs=pl.BlockSpec((coutp, L), lane_map),
        out_shape=jax.ShapeDtypeStruct((coutp, B * lp), jnp.float32),
        compiler_params=pltpu.CompilerParams(
            dimension_semantics=(pltpu.PARALLEL,)),
    )(xp, mask, w_all)

    # (coutp, B*lp) -> (B, cout, H, W): drop channel pad, lane pad and halo ring.
    out = out.reshape(coutp, B, lp)[:cout, :, :np_valid].reshape(cout, B, hp, wp)
    return jnp.transpose(out[:, :, 1:H + 1, 1:W + 1], (1, 0, 2, 3))


def related_atten_aggregation(x, params):
    """x: (B, Cin, H, W) float32 (NCHW, like PyTorch) -> (B, Cout, H, W)."""
    return _forward(x, params, batch_on_grid=_batch_on_grid_default())


# ----------------------------------------------------------------------------
# Parameter construction (deterministic, synthetic; BN in eval mode)
# ----------------------------------------------------------------------------
def make_params(key, input_img_num=2, output_channels=16, input_mode="GRG"):
    if input_mode == "RGB":
        cin = input_img_num * 3
    elif input_mode == "GRG":
        cin = input_img_num + 2
    else:
        raise ValueError("input_mode error!")

    eps = 1e-5
    params = {}
    chans = [(cin, cin), (cin, cin), (cin, output_channels)]
    for i, (ci, co) in enumerate(chans, start=1):
        key, kw, kg, kb, km, kv = jax.random.split(key, 6)
        w = jax.random.normal(kw, (3, 3, ci, co), jnp.float32) * 0.2   # HWIO
        gamma = jax.random.uniform(kg, (co,), jnp.float32, 0.5, 1.5)
        beta = jax.random.normal(kb, (co,), jnp.float32) * 0.1
        rmean = jax.random.normal(km, (co,), jnp.float32) * 0.1
        rvar = jax.random.uniform(kv, (co,), jnp.float32, 0.5, 1.5)
        scale = gamma / jnp.sqrt(rvar + eps)
        bias = beta - rmean * scale
        params[f"conv{i}"] = (w, scale, bias)
    return params, cin


# ----------------------------------------------------------------------------
# Pure-JAX reference (NCHW, same folded-BN semantics)
# ----------------------------------------------------------------------------
def _ref_block(x, w, scale, bias):
    y = jax.lax.conv_general_dilated(
        x, w, window_strides=(1, 1), padding="SAME",
        dimension_numbers=("NCHW", "HWIO", "NCHW"),
        precision=jax.lax.Precision.HIGHEST)
    y = y * scale[None, :, None, None] + bias[None, :, None, None]
    return jnp.where(y > 0, y, 0.1 * y)                 # nn.LeakyReLU(0.1)


def ref_forward(x, params):
    out1 = _ref_block(x, *params["conv1"])
    f1 = _ref_block(out1, *params["conv2"])
    out2 = out1 + out1 * jax.nn.sigmoid(f1)
    return _ref_block(out2, *params["conv3"])


# ----------------------------------------------------------------------------
if __name__ == "__main__":
    key = jax.random.PRNGKey(0)
    kparams, kx = jax.random.split(key)

    B, H, W = 2, 16, 16
    params, cin = make_params(kparams, input_img_num=2, output_channels=16,
                              input_mode="GRG")              # cin = 4
    x = jax.random.normal(kx, (B, cin, H, W), jnp.float32)   # NCHW, like PyTorch

    out = jax.block_until_ready(related_atten_aggregation(x, params))
    assert out.shape == (B, 16, H, W), out.shape

    ref = jax.block_until_ready(ref_forward(x, params))
    max_err = float(jnp.max(jnp.abs(out - ref)))
    if not jnp.allclose(out, ref, atol=1e-3, rtol=1e-3):
        raise AssertionError(f"mismatch vs reference, max abs err = {max_err}")

    print("KERNEL_OK")
</pallas_src>

<mosaic_0001>
module attributes {stable_mosaic.version = 11 : i64} {
  func.func @fused_kernel(%arg0: i32, %arg1: memref<8x768xf32, #tpu.memory_space<vmem>>, %arg2: memref<1x768xf32, #tpu.memory_space<vmem>>, %arg3: memref<32x73xf32, #tpu.memory_space<vmem>>, %arg4: memref<16x768xf32, #tpu.memory_space<vmem>>) attributes {dimension_semantics = [#tpu.dimension_semantics<parallel>], iteration_bounds = array<i64: 1>, scalar_prefetch = 0 : i64, scratch_operands = 0 : i64, tpu.core_type = #tpu.core_type<tc>, window_params = [{pipeline_mode = #tpu.pipeline_mode<synchronous>, transform_indices = @transform_0, window_bounds = array<i64: 8, 768>}, {pipeline_mode = #tpu.pipeline_mode<synchronous>, transform_indices = @transform_1, window_bounds = array<i64: 1, 768>}, {pipeline_mode = #tpu.pipeline_mode<synchronous>, transform_indices = @transform_2, window_bounds = array<i64: 32, 73>}, {pipeline_mode = #tpu.pipeline_mode<synchronous>, transform_indices = @transform_3, window_bounds = array<i64: 16, 768>}]} {
    %c0 = arith.constant 0 : index
    %c0_0 = arith.constant 0 : index
    %0 = vector.load %arg2[%c0, %c0_0] : memref<1x768xf32, #tpu.memory_space<vmem>>, vector<1x768xf32>
    %cst = arith.constant 1.000000e+00 : f32
    %1 = vector.broadcast %cst : f32 to vector<1x768xf32>
    %c0_1 = arith.constant 0 : index
    %c0_2 = arith.constant 0 : index
    %2 = vector.load %arg1[%c0_1, %c0_2] : memref<8x768xf32, #tpu.memory_space<vmem>>, vector<8x768xf32>
    %c0_3 = arith.constant 0 : index
    %c0_4 = arith.constant 0 : index
    %3 = vector.load %arg3[%c0_3, %c0_4] : memref<32x73xf32, #tpu.memory_space<vmem>>, vector<8x73xf32>
    %c19_i32 = arith.constant 19 : i32
    %4 = tpu.dynamic_rotate %2 by %c19_i32 dim 1 : vector<8x768xf32>, i32 -> vector<8x768xf32>
    %c18_i32 = arith.constant 18 : i32
    %5 = tpu.dynamic_rotate %2 by %c18_i32 dim 1 : vector<8x768xf32>, i32 -> vector<8x768xf32>
    %c17_i32 = arith.constant 17 : i32
    %6 = tpu.dynamic_rotate %2 by %c17_i32 dim 1 : vector<8x768xf32>, i32 -> vector<8x768xf32>
    %c1_i32 = arith.constant 1 : i32
    %7 = tpu.dynamic_rotate %2 by %c1_i32 dim 1 : vector<8x768xf32>, i32 -> vector<8x768xf32>
    %c767_i32 = arith.constant 767 : i32
    %8 = tpu.dynamic_rotate %2 by %c767_i32 dim 1 : vector<8x768xf32>, i32 -> vector<8x768xf32>
    %c751_i32 = arith.constant 751 : i32
    %9 = tpu.dynamic_rotate %2 by %c751_i32 dim 1 : vector<8x768xf32>, i32 -> vector<8x768xf32>
    %c750_i32 = arith.constant 750 : i32
    %10 = tpu.dynamic_rotate %2 by %c750_i32 dim 1 : vector<8x768xf32>, i32 -> vector<8x768xf32>
    %c749_i32 = arith.constant 749 : i32
    %11 = tpu.dynamic_rotate %2 by %c749_i32 dim 1 : vector<8x768xf32>, i32 -> vector<8x768xf32>
    %12 = tpu.concatenate %4, %5, %6, %7, %2, %8, %9, %10, %11, %1 in 0 : vector<8x768xf32>, vector<8x768xf32>, vector<8x768xf32>, vector<8x768xf32>, vector<8x768xf32>, vector<8x768xf32>, vector<8x768xf32>, vector<8x768xf32>, vector<8x768xf32>, vector<1x768xf32> -> vector<73x768xf32>
    %cst_5 = arith.constant dense<0.000000e+00> : vector<8x768xf32>
    %13 = tpu.matmul %3, %12, %cst_5 {dimension_numbers = #tpu.dot_dimension_numbers<[1], [0], [0], [1], [0, 0, 1, 1], [], []>} : vector<8x73xf32>, vector<73x768xf32>, vector<8x768xf32> -> vector<8x768xf32>
    %cst_6 = arith.constant 1.000000e-01 : f32
    %14 = vector.broadcast %cst_6 : f32 to vector<8x768xf32>
    %15 = arith.mulf %14, %13 : vector<8x768xf32>
    %16 = arith.maximumf %13, %15 : vector<8x768xf32>
    %17 = vector.broadcast %0 : vector<1x768xf32> to vector<8x768xf32>
    %18 = arith.mulf %16, %17 : vector<8x768xf32>
    %c8 = arith.constant 8 : index
    %c0_7 = arith.constant 0 : index
    %19 = vector.load %arg3[%c8, %c0_7] : memref<32x73xf32, #tpu.memory_space<vmem>>, vector<8x73xf32>
    %c19_i32_8 = arith.constant 19 : i32
    %20 = tpu.dynamic_rotate %18 by %c19_i32_8 dim 1 : vector<8x768xf32>, i32 -> vector<8x768xf32>
    %c18_i32_9 = arith.constant 18 : i32
    %21 = tpu.dynamic_rotate %18 by %c18_i32_9 dim 1 : vector<8x768xf32>, i32 -> vector<8x768xf32>
    %c17_i32_10 = arith.constant 17 : i32
    %22 = tpu.dynamic_rotate %18 by %c17_i32_10 dim 1 : vector<8x768xf32>, i32 -> vector<8x768xf32>
    %c1_i32_11 = arith.constant 1 : i32
    %23 = tpu.dynamic_rotate %18 by %c1_i32_11 dim 1 : vector<8x768xf32>, i32 -> vector<8x768xf32>
    %c767_i32_12 = arith.constant 767 : i32
    %24 = tpu.dynamic_rotate %18 by %c767_i32_12 dim 1 : vector<8x768xf32>, i32 -> vector<8x768xf32>
    %c751_i32_13 = arith.constant 751 : i32
    %25 = tpu.dynamic_rotate %18 by %c751_i32_13 dim 1 : vector<8x768xf32>, i32 -> vector<8x768xf32>
    %c750_i32_14 = arith.constant 750 : i32
    %26 = tpu.dynamic_rotate %18 by %c750_i32_14 dim 1 : vector<8x768xf32>, i32 -> vector<8x768xf32>
    %c749_i32_15 = arith.constant 749 : i32
    %27 = tpu.dynamic_rotate %18 by %c749_i32_15 dim 1 : vector<8x768xf32>, i32 -> vector<8x768xf32>
    %28 = tpu.concatenate %20, %21, %22, %23, %18, %24, %25, %26, %27, %1 in 0 : vector<8x768xf32>, vector<8x768xf32>, vector<8x768xf32>, vector<8x768xf32>, vector<8x768xf32>, vector<8x768xf32>, vector<8x768xf32>, vector<8x768xf32>, vector<8x768xf32>, vector<1x768xf32> -> vector<73x768xf32>
    %cst_16 = arith.constant dense<0.000000e+00> : vector<8x768xf32>
    %29 = tpu.matmul %19, %28, %cst_16 {dimension_numbers = #tpu.dot_dimension_numbers<[1], [0], [0], [1], [0, 0, 1, 1], [], []>} : vector<8x73xf32>, vector<73x768xf32>, vector<8x768xf32> -> vector<8x768xf32>
    %cst_17 = arith.constant 1.000000e-01 : f32
    %30 = vector.broadcast %cst_17 : f32 to vector<8x768xf32>
    %31 = arith.mulf %30, %29 : vector<8x768xf32>
    %32 = arith.maximumf %29, %31 : vector<8x768xf32>
    %33 = arith.negf %32 : vector<8x768xf32>
    %34 = math.exp %33 : vector<8x768xf32>
    %cst_18 = arith.constant 1.000000e+00 : f32
    %35 = vector.broadcast %cst_18 : f32 to vector<8x768xf32>
    %36 = arith.addf %35, %34 : vector<8x768xf32>
    %37 = arith.divf %35, %36 : vector<8x768xf32>
    %cst_19 = arith.constant 1.000000e+00 : f32
    %38 = vector.broadcast %cst_19 : f32 to vector<8x768xf32>
    %39 = arith.addf %38, %37 : vector<8x768xf32>
    %40 = arith.mulf %18, %39 : vector<8x768xf32>
    %c16 = arith.constant 16 : index
    %c0_20 = arith.constant 0 : index
    %41 = vector.load %arg3[%c16, %c0_20] : memref<32x73xf32, #tpu.memory_space<vmem>>, vector<16x73xf32>
    %c19_i32_21 = arith.constant 19 : i32
    %42 = tpu.dynamic_rotate %40 by %c19_i32_21 dim 1 : vector<8x768xf32>, i32 -> vector<8x768xf32>
    %c18_i32_22 = arith.constant 18 : i32
    %43 = tpu.dynamic_rotate %40 by %c18_i32_22 dim 1 : vector<8x768xf32>, i32 -> vector<8x768xf32>
    %c17_i32_23 = arith.constant 17 : i32
    %44 = tpu.dynamic_rotate %40 by %c17_i32_23 dim 1 : vector<8x768xf32>, i32 -> vector<8x768xf32>
    %c1_i32_24 = arith.constant 1 : i32
    %45 = tpu.dynamic_rotate %40 by %c1_i32_24 dim 1 : vector<8x768xf32>, i32 -> vector<8x768xf32>
    %c767_i32_25 = arith.constant 767 : i32
    %46 = tpu.dynamic_rotate %40 by %c767_i32_25 dim 1 : vector<8x768xf32>, i32 -> vector<8x768xf32>
    %c751_i32_26 = arith.constant 751 : i32
    %47 = tpu.dynamic_rotate %40 by %c751_i32_26 dim 1 : vector<8x768xf32>, i32 -> vector<8x768xf32>
    %c750_i32_27 = arith.constant 750 : i32
    %48 = tpu.dynamic_rotate %40 by %c750_i32_27 dim 1 : vector<8x768xf32>, i32 -> vector<8x768xf32>
    %c749_i32_28 = arith.constant 749 : i32
    %49 = tpu.dynamic_rotate %40 by %c749_i32_28 dim 1 : vector<8x768xf32>, i32 -> vector<8x768xf32>
    %50 = tpu.concatenate %42, %43, %44, %45, %40, %46, %47, %48, %49, %1 in 0 : vector<8x768xf32>, vector<8x768xf32>, vector<8x768xf32>, vector<8x768xf32>, vector<8x768xf32>, vector<8x768xf32>, vector<8x768xf32>, vector<8x768xf32>, vector<8x768xf32>, vector<1x768xf32> -> vector<73x768xf32>
    %cst_29 = arith.constant dense<0.000000e+00> : vector<16x768xf32>
    %51 = tpu.matmul %41, %50, %cst_29 {dimension_numbers = #tpu.dot_dimension_numbers<[1], [0], [0], [1], [0, 0, 1, 1], [], []>} : vector<16x73xf32>, vector<73x768xf32>, vector<16x768xf32> -> vector<16x768xf32>
    %cst_30 = arith.constant 1.000000e-01 : f32
    %52 = vector.broadcast %cst_30 : f32 to vector<16x768xf32>
    %53 = arith.mulf %52, %51 : vector<16x768xf32>
    %54 = arith.maximumf %51, %53 : vector<16x768xf32>
    %c0_31 = arith.constant 0 : index
    %c0_32 = arith.constant 0 : index
    %55 = vector.load %arg4[%c0_31, %c0_32] : memref<16x768xf32, #tpu.memory_space<vmem>>, vector<16x768xf32>
    tpu.vector_store %arg4[%c0_31, %c0_32], %54 {strides = array<i32>} : memref<16x768xf32, #tpu.memory_space<vmem>>, vector<16x768xf32>,
    return
  }
  func.func @transform_0(%arg0: i32) -> (i32, i32) {
    %c0_i32 = arith.constant 0 : i32
    %c0_i32_0 = arith.constant 0 : i32
    %c0_i32_1 = arith.constant 0 : i32
    return %c0_i32, %c0_i32_0 : i32, i32
  }
  func.func @transform_1(%arg0: i32) -> (i32, i32) {
    %c0_i32 = arith.constant 0 : i32
    %c0_i32_0 = arith.constant 0 : i32
    %c0_i32_1 = arith.constant 0 : i32
    return %c0_i32, %c0_i32_0 : i32, i32
  }
  func.func @transform_2(%arg0: i32) -> (i32, i32) {
    %c0_i32 = arith.constant 0 : i32
    %c0_i32_0 = arith.constant 0 : i32
    %c0_i32_1 = arith.constant 0 : i32
    return %c0_i32, %c0_i32_0 : i32, i32
  }
  func.func @transform_3(%arg0: i32) -> (i32, i32) {
    %c0_i32 = arith.constant 0 : i32
    %c0_i32_0 = arith.constant 0 : i32
    %c0_i32_1 = arith.constant 0 : i32
    return %c0_i32, %c0_i32_0 : i32, i32
  }
}

</mosaic_0001>

<llo_original>
// kernel: _forward.1
$region0: #{_forward.1}
  #allocation0 [shape = 'u32[]', space=smem, size = 0x4, offset = 0x4, fixed_abs, tag = 'smem constant byte address 0x4 - core index']
  #allocation1 [shape = 'u32[72,128]{1,0:T(1,128)}', space=vmem, size = 0x9000, scoped, tag = 'internal scratch']
  %s0 = inlined_call_operand.vmem [shape: f32[8,768], index: 0, kind: input, shape index: {}]
  %s1 = inlined_call_operand.vmem [shape: f32[1,768], index: 1, kind: input, shape index: {}]
  %s2 = inlined_call_operand.vmem [shape: f32[32,73], index: 2, kind: input, shape index: {}]
  %s3 = inlined_call_operand.vmem [shape: f32[16,768], index: 3, kind: output, shape index: {}]
  %s4 = sld [smem:[#allocation0]]
  $region22: #{_forward.1} parent=0
    _
  %s6 = ssub.s32 1, %s4
  %s7 = scalar_select 0, %s6, %s4
  // Predicated region
  $region2: #{_forward.1} parent=0 // pred_check
    _
  $region3: #{_forward.1} parent=0 // pred_check_branch
    %9 = sbr.rel (0) target = $region5
  $region4: #{_forward.1} parent=0 // pred_region
    _
  $region5: #{_forward.1} parent=0 // pred_fallthru
    _
  // Predicated region
  $region6: #{_forward.1} parent=0 // pred_check
    _
  $region7: #{_forward.1} parent=0 // pred_check_branch
    %11 = sbr.rel (0) target = $region9
  $region8: #{_forward.1} parent=0 // pred_region
    _
  $region9: #{_forward.1} parent=0 // pred_fallthru
    _
  // Predicated region
  $region10: #{_forward.1} parent=0 // pred_check
    _
  $region11: #{_forward.1} parent=0 // pred_check_branch
    %13 = sbr.rel (0) target = $region13
  $region12: #{_forward.1} parent=0 // pred_region
    _
  $region13: #{_forward.1} parent=0 // pred_fallthru
    _
  %v14 = vld [vmem:[%s1] sm:$0x3f]
  %v15 = vld [vmem:[%s0] sm:$0xff]
  %v16 = vld [vmem:[%s0 + $0x8] sm:$0xff]
  %v17 = vld [vmem:[%s0 + $0x10] sm:$0xff]
  %v18 = vld [vmem:[%s0 + $0x18] sm:$0xff]
  %v19 = vld [vmem:[%s0 + $0x20] sm:$0xff]
  %v20 = vld [vmem:[%s0 + $0x28] sm:$0xff]
  %v21 = vld [vmem:[%s2] sm:$0xff]
  %22 = vrot.lane.b32.xlu0 %v15, 19
  %v23 = vpop.permute.xlu0 %22
  %24 = vrot.lane.b32.xlu0 %v16, 19
  %v25 = vpop.permute.xlu0 %24
  %26 = vrot.lane.b32.xlu0 %v17, 19
  %v27 = vpop.permute.xlu0 %26
  %28 = vrot.lane.b32.xlu0 %v18, 19
  %v29 = vpop.permute.xlu0 %28
  %30 = vrot.lane.b32.xlu0 %v19, 19
  %v31 = vpop.permute.xlu0 %30
  %32 = vrot.lane.b32.xlu0 %v20, 19
  %v33 = vpop.permute.xlu0 %32
  %v34 = vlaneseq
  %v35 = vand.u32 %v34, 127
  %vm36 = vcmp.lt.s32.totalorder %v35, 19
  %v37 = vsel %vm36, %v31, %v33
  %v38 = vsel %vm36, %v29, %v31
  %v39 = vsel %vm36, %v27, %v29
  %v40 = vsel %vm36, %v25, %v27
  %v41 = vsel %vm36, %v23, %v25
  %v42 = vsel %vm36, %v33, %v23
  %43 = vrot.lane.b32.xlu0 %v15, 18
  %v44 = vpop.permute.xlu0 %43
  %45 = vrot.lane.b32.xlu0 %v16, 18
  %v46 = vpop.permute.xlu0 %45
  %47 = vrot.lane.b32.xlu0 %v17, 18
  %v48 = vpop.permute.xlu0 %47
  %49 = vrot.lane.b32.xlu0 %v18, 18
  %v50 = vpop.permute.xlu0 %49
  %51 = vrot.lane.b32.xlu0 %v19, 18
  %v52 = vpop.permute.xlu0 %51
  %53 = vrot.lane.b32.xlu0 %v20, 18
  %v54 = vpop.permute.xlu0 %53
  %vm55 = vcmp.lt.s32.totalorder %v35, 18
  %v56 = vsel %vm55, %v52, %v54
  %v57 = vsel %vm55, %v50, %v52
  %v58 = vsel %vm55, %v48, %v50
  %v59 = vsel %vm55, %v46, %v48
  %v60 = vsel %vm55, %v44, %v46
  %v61 = vsel %vm55, %v54, %v44
  %62 = vrot.lane.b32.xlu0 %v15, 17
  %v63 = vpop.permute.xlu0 %62
  %64 = vrot.lane.b32.xlu0 %v16, 17
  %v65 = vpop.permute.xlu0 %64
  %66 = vrot.lane.b32.xlu0 %v17, 17
  %v67 = vpop.permute.xlu0 %66
  %68 = vrot.lane.b32.xlu0 %v18, 17
  %v69 = vpop.permute.xlu0 %68
  %70 = vrot.lane.b32.xlu0 %v19, 17
  %v71 = vpop.permute.xlu0 %70
  %72 = vrot.lane.b32.xlu0 %v20, 17
  %v73 = vpop.permute.xlu0 %72
  %vm74 = vcmp.lt.s32.totalorder %v35, 17
  %v75 = vsel %vm74, %v71, %v73
  %v76 = vsel %vm74, %v69, %v71
  %v77 = vsel %vm74, %v67, %v69
  %v78 = vsel %vm74, %v65, %v67
  %v79 = vsel %vm74, %v63, %v65
  %v80 = vsel %vm74, %v73, %v63
  %81 = vrot.lane.b32.xlu0 %v15, 1
  %v82 = vpop.permute.xlu0 %81
  %83 = vrot.lane.b32.xlu0 %v16, 1
  %v84 = vpop.permute.xlu0 %83
  %85 = vrot.lane.b32.xlu0 %v17, 1
  %v86 = vpop.permute.xlu0 %85
  %87 = vrot.lane.b32.xlu0 %v18, 1
  %v88 = vpop.permute.xlu0 %87
  %89 = vrot.lane.b32.xlu0 %v19, 1
  %v90 = vpop.permute.xlu0 %89
  %91 = vrot.lane.b32.xlu0 %v20, 1
  %v92 = vpop.permute.xlu0 %91
  %vm93 = vcmp.lt.s32.totalorder %v35, 1
  %v94 = vsel %vm93, %v90, %v92
  %v95 = vsel %vm93, %v88, %v90
  %v96 = vsel %vm93, %v86, %v88
  %v97 = vsel %vm93, %v84, %v86
  %v98 = vsel %vm93, %v82, %v84
  %v99 = vsel %vm93, %v92, %v82
  %100 = vrot.lane.b32.xlu0 %v15, 127
  %v101 = vpop.permute.xlu0 %100
  %102 = vrot.lane.b32.xlu0 %v16, 127
  %v103 = vpop.permute.xlu0 %102
  %104 = vrot.lane.b32.xlu0 %v17, 127
  %v105 = vpop.permute.xlu0 %104
  %106 = vrot.lane.b32.xlu0 %v18, 127
  %v107 = vpop.permute.xlu0 %106
  %108 = vrot.lane.b32.xlu0 %v19, 127
  %v109 = vpop.permute.xlu0 %108
  %110 = vrot.lane.b32.xlu0 %v20, 127
  %v111 = vpop.permute.xlu0 %110
  %vm112 = vcmp.lt.s32.totalorder %v35, 127
  %v113 = vsel %vm112, %v109, %v111
  %v114 = vsel %vm112, %v107, %v109
  %v115 = vsel %vm112, %v105, %v107
  %v116 = vsel %vm112, %v103, %v105
  %v117 = vsel %vm112, %v101, %v103
  %v118 = vsel %vm112, %v111, %v101
  %119 = vrot.lane.b32.xlu0 %v15, 111
  %v120 = vpop.permute.xlu0 %119
  %121 = vrot.lane.b32.xlu0 %v16, 111
  %v122 = vpop.permute.xlu0 %121
  %123 = vrot.lane.b32.xlu0 %v17, 111
  %v124 = vpop.permute.xlu0 %123
  %125 = vrot.lane.b32.xlu0 %v18, 111
  %v126 = vpop.permute.xlu0 %125
  %127 = vrot.lane.b32.xlu0 %v19, 111
  %v128 = vpop.permute.xlu0 %127
  %129 = vrot.lane.b32.xlu0 %v20, 111
  %v130 = vpop.permute.xlu0 %129
  %vm131 = vcmp.lt.s32.totalorder %v35, 111
  %v132 = vsel %vm131, %v128, %v130
  %v133 = vsel %vm131, %v126, %v128
  %v134 = vsel %vm131, %v124, %v126
  %v135 = vsel %vm131, %v122, %v124
  %v136 = vsel %vm131, %v120, %v122
  %v137 = vsel %vm131, %v130, %v120
  %138 = vrot.lane.b32.xlu0 %v15, 110
  %v139 = vpop.permute.xlu0 %138
  %140 = vrot.lane.b32.xlu0 %v16, 110
  %v141 = vpop.permute.xlu0 %140
  %142 = vrot.lane.b32.xlu0 %v17, 110
  %v143 = vpop.permute.xlu0 %142
  %144 = vrot.lane.b32.xlu0 %v18, 110
  %v145 = vpop.permute.xlu0 %144
  %146 = vrot.lane.b32.xlu0 %v19, 110
  %v147 = vpop.permute.xlu0 %146
  %148 = vrot.lane.b32.xlu0 %v20, 110
  %v149 = vpop.permute.xlu0 %148
  %vm150 = vcmp.lt.s32.totalorder %v35, 110
  %v151 = vsel %vm150, %v147, %v149
  %v152 = vsel %vm150, %v145, %v147
  %v153 = vsel %vm150, %v143, %v145
  %v154 = vsel %vm150, %v141, %v143
  %v155 = vsel %vm150, %v139, %v141
  %v156 = vsel %vm150, %v149, %v139
  %157 = vrot.lane.b32.xlu0 %v15, 109
  %v158 = vpop.permute.xlu0 %157
  %159 = vrot.lane.b32.xlu0 %v16, 109
  %v160 = vpop.permute.xlu0 %159
  %161 = vrot.lane.b32.xlu0 %v17, 109
  %v162 = vpop.permute.xlu0 %161
  %163 = vrot.lane.b32.xlu0 %v18, 109
  %v164 = vpop.permute.xlu0 %163
  %165 = vrot.lane.b32.xlu0 %v19, 109
  %v166 = vpop.permute.xlu0 %165
  %167 = vrot.lane.b32.xlu0 %v20, 109
  %v168 = vpop.permute.xlu0 %167
  %vm169 = vcmp.lt.s32.totalorder %v35, 109
  %v170 = vsel %vm169, %v166, %v168
  %v171 = vsel %vm169, %v164, %v166
  %v172 = vsel %vm169, %v162, %v164
  %v173 = vsel %vm169, %v160, %v162
  %v174 = vsel %vm169, %v158, %v160
  %v175 = vsel %vm169, %v168, %v158
  %vm176 = vcmask 596992
  %v178 = vsel %vm176, %v21, 0
  %vm180 = vcmask 1040384
  %v182 = vsel %vm180, 1.0, 0
  %184 = vmatpush.msra.mxu0 0.0
  %185 = vmatpush.msra.mxu0 0.0
  %186 = vmatpush.msra.mxu0 0.0
  %187 = vmatpush.msra.mxu0 0.0
  %188 = vmatpush.msra.mxu0 0.0
  %189 = vmatpush.msra.mxu0 0.0
  %190 = vmatpush.msra.mxu0 %v182
  %191 = vmatpush.msra.mxu0 %v174
  %192 = vmatpush.msra.mxu0 %v155
  %193 = vmatpush.msra.mxu0 %v136
  %194 = vmatpush.msra.mxu0 %v117
  %195 = vmatpush.msra.mxu0 %v15
  %196 = vmatpush.msra.mxu0 %v99
  %197 = vmatpush.msra.mxu0 %v80
  %198 = vmatpush.msra.mxu0 %v61
  %199 = vmatpush.msra.mxu0 %v42
  %200 = vmatmul.f32.gmra.mxu0 %v178
  %v201 = vpop.f32.mrf.mxu0
  %v202 = vadd.f32 0.0, %v201
  %203 = vdwg.mxu0
  %204 = vmatpush.msra.mxu0 0.0
  %205 = vmatpush.msra.mxu0 0.0
  %206 = vmatpush.msra.mxu0 0.0
  %207 = vmatpush.msra.mxu0 0.0
  %208 = vmatpush.msra.mxu0 0.0
  %209 = vmatpush.msra.mxu0 0.0
  %210 = vmatpush.msra.mxu0 %v182
  %211 = vmatpush.msra.mxu0 %v173
  %212 = vmatpush.msra.mxu0 %v154
  %213 = vmatpush.msra.mxu0 %v135
  %214 = vmatpush.msra.mxu0 %v116
  %215 = vmatpush.msra.mxu0 %v16
  %216 = vmatpush.msra.mxu0 %v98
  %217 = vmatpush.msra.mxu0 %v79
  %218 = vmatpush.msra.mxu0 %v60
  %219 = vmatpush.msra.mxu0 %v41
  %220 = vmatmul.f32.gmra.mxu0 %v178
  %v221 = vpop.f32.mrf.mxu0
  %v222 = vadd.f32 0.0, %v221
  %223 = vdwg.mxu0
  %224 = vmatpush.msra.mxu0 0.0
  %225 = vmatpush.msra.mxu0 0.0
  %226 = vmatpush.msra.mxu0 0.0
  %227 = vmatpush.msra.mxu0 0.0
  %228 = vmatpush.msra.mxu0 0.0
  %229 = vmatpush.msra.mxu0 0.0
  %230 = vmatpush.msra.mxu0 %v182
  %231 = vmatpush.msra.mxu0 %v172
  %232 = vmatpush.msra.mxu0 %v153
  %233 = vmatpush.msra.mxu0 %v134
  %234 = vmatpush.msra.mxu0 %v115
  %235 = vmatpush.msra.mxu0 %v17
  %236 = vmatpush.msra.mxu0 %v97
  %237 = vmatpush.msra.mxu0 %v78
  %238 = vmatpush.msra.mxu0 %v59
  %239 = vmatpush.msra.mxu0 %v40
  %240 = vmatmul.f32.gmra.mxu0 %v178
  %v241 = vpop.f32.mrf.mxu0
  %v242 = vadd.f32 0.0, %v241
  %243 = vdwg.mxu0
  %244 = vmatpush.msra.mxu0 0.0
  %245 = vmatpush.msra.mxu0 0.0
  %246 = vmatpush.msra.mxu0 0.0
  %247 = vmatpush.msra.mxu0 0.0
  %248 = vmatpush.msra.mxu0 0.0
  %249 = vmatpush.msra.mxu0 0.0
  %250 = vmatpush.msra.mxu0 %v182
  %251 = vmatpush.msra.mxu0 %v171
  %252 = vmatpush.msra.mxu0 %v152
  %253 = vmatpush.msra.mxu0 %v133
  %254 = vmatpush.msra.mxu0 %v114
  %255 = vmatpush.msra.mxu0 %v18
  %256 = vmatpush.msra.mxu0 %v96
  %257 = vmatpush.msra.mxu0 %v77
  %258 = vmatpush.msra.mxu0 %v58
  %259 = vmatpush.msra.mxu0 %v39
  %260 = vmatmul.f32.gmra.mxu0 %v178
  %v261 = vpop.f32.mrf.mxu0
  %v262 = vadd.f32 0.0, %v261
  %263 = vdwg.mxu0
  %264 = vmatpush.msra.mxu0 0.0
  %265 = vmatpush.msra.mxu0 0.0
  %266 = vmatpush.msra.mxu0 0.0
  %267 = vmatpush.msra.mxu0 0.0
  %268 = vmatpush.msra.mxu0 0.0
  %269 = vmatpush.msra.mxu0 0.0
  %270 = vmatpush.msra.mxu0 %v182
  %271 = vmatpush.msra.mxu0 %v170
  %272 = vmatpush.msra.mxu0 %v151
  %273 = vmatpush.msra.mxu0 %v132
  %274 = vmatpush.msra.mxu0 %v113
  %275 = vmatpush.msra.mxu0 %v19
  %276 = vmatpush.msra.mxu0 %v95
  %277 = vmatpush.msra.mxu0 %v76
  %278 = vmatpush.msra.mxu0 %v57
  %279 = vmatpush.msra.mxu0 %v38
  %280 = vmatmul.f32.gmra.mxu0 %v178
  %v281 = vpop.f32.mrf.mxu0
  %v282 = vadd.f32 0.0, %v281
  %283 = vdwg.mxu0
  %284 = vmatpush.msra.mxu0 0.0
  %285 = vmatpush.msra.mxu0 0.0
  %286 = vmatpush.msra.mxu0 0.0
  %287 = vmatpush.msra.mxu0 0.0
  %288 = vmatpush.msra.mxu0 0.0
  %289 = vmatpush.msra.mxu0 0.0
  %290 = vmatpush.msra.mxu0 %v182
  %291 = vmatpush.msra.mxu0 %v175
  %292 = vmatpush.msra.mxu0 %v156
  %293 = vmatpush.msra.mxu0 %v137
  %294 = vmatpush.msra.mxu0 %v118
  %295 = vmatpush.msra.mxu0 %v20
  %296 = vmatpush.msra.mxu0 %v94
  %297 = vmatpush.msra.mxu0 %v75
  %298 = vmatpush.msra.mxu0 %v56
  %299 = vmatpush.msra.mxu0 %v37
  %300 = vmatmul.f32.gmra.mxu0 %v178
  %v301 = vpop.f32.mrf.mxu0
  %v302 = vadd.f32 0.0, %v301
  %303 = vdwg.mxu0
  %v304 = vmul.f32 %v202, 0.1
  %v305 = vmul.f32 %v222, 0.1
  %v306 = vmul.f32 %v242, 0.1
  %v307 = vmul.f32 %v262, 0.1
  %v308 = vmul.f32 %v282, 0.1
  %v309 = vmul.f32 %v302, 0.1
  %v310 = vmax.f32 %v202, %v304
  %v311 = vmax.f32 %v222, %v305
  %v312 = vmax.f32 %v242, %v306
  %v313 = vmax.f32 %v262, %v307
  %v314 = vmax.f32 %v282, %v308
  %v315 = vmax.f32 %v302, %v309
  %v317 = vperm.slane %v14, 0
  %v318 = vperm.slane %v14, 1
  %v319 = vperm.slane %v14, 2
  %v320 = vperm.slane %v14, 3
  %v321 = vperm.slane %v14, 4
  %v322 = vperm.slane %v14, 5
  %v329 = vmul.f32 %v310, %v317
  %v330 = vmul.f32 %v311, %v318
  %v331 = vmul.f32 %v312, %v319
  %v332 = vmul.f32 %v313, %v320
  %v333 = vmul.f32 %v314, %v321
  %v334 = vmul.f32 %v315, %v322
  %v335 = vld [vmem:[%s2 + $0x8] sm:$0xff]
  %336 = vrot.lane.b32.xlu0 %v329, 19
  %v337 = vpop.permute.xlu0 %336
  %338 = vrot.lane.b32.xlu0 %v330, 19
  %v339 = vpop.permute.xlu0 %338
  %340 = vrot.lane.b32.xlu0 %v331, 19
  %v341 = vpop.permute.xlu0 %340
  %342 = vrot.lane.b32.xlu0 %v332, 19
  %v343 = vpop.permute.xlu0 %342
  %344 = vrot.lane.b32.xlu0 %v333, 19
  %v345 = vpop.permute.xlu0 %344
  %346 = vrot.lane.b32.xlu0 %v334, 19
  %v347 = vpop.permute.xlu0 %346
  %v348 = vsel %vm36, %v345, %v347
  %v349 = vsel %vm36, %v343, %v345
  %v350 = vsel %vm36, %v341, %v343
  %v351 = vsel %vm36, %v339, %v341
  %v352 = vsel %vm36, %v337, %v339
  %v353 = vsel %vm36, %v347, %v337
  %354 = vrot.lane.b32.xlu0 %v329, 18
  %v355 = vpop.permute.xlu0 %354
  %356 = vrot.lane.b32.xlu0 %v330, 18
  %v357 = vpop.permute.xlu0 %356
  %358 = vrot.lane.b32.xlu0 %v331, 18
  %v359 = vpop.permute.xlu0 %358
  %360 = vrot.lane.b32.xlu0 %v332, 18
  %v361 = vpop.permute.xlu0 %360
  %362 = vrot.lane.b32.xlu0 %v333, 18
  %v363 = vpop.permute.xlu0 %362
  %364 = vrot.lane.b32.xlu0 %v334, 18
  %v365 = vpop.permute.xlu0 %364
  %v366 = vsel %vm55, %v363, %v365
  %v367 = vsel %vm55, %v361, %v363
  %v368 = vsel %vm55, %v359, %v361
  %v369 = vsel %vm55, %v357, %v359
  %v370 = vsel %vm55, %v355, %v357
  %v371 = vsel %vm55, %v365, %v355
  %372 = vrot.lane.b32.xlu0 %v329, 17
  %v373 = vpop.permute.xlu0 %372
  %374 = vrot.lane.b32.xlu0 %v330, 17
  %v375 = vpop.permute.xlu0 %374
  %376 = vrot.lane.b32.xlu0 %v331, 17
  %v377 = vpop.permute.xlu0 %376
  %378 = vrot.lane.b32.xlu0 %v332, 17
  %v379 = vpop.permute.xlu0 %378
  %380 = vrot.lane.b32.xlu0 %v333, 17
  %v381 = vpop.permute.xlu0 %380
  %382 = vrot.lane.b32.xlu0 %v334, 17
  %v383 = vpop.permute.xlu0 %382
  %v384 = vsel %vm74, %v381, %v383
  %v385 = vsel %vm74, %v379, %v381
  %v386 = vsel %vm74, %v377, %v379
  %v387 = vsel %vm74, %v375, %v377
  %v388 = vsel %vm74, %v373, %v375
  %v389 = vsel %vm74, %v383, %v373
  %390 = vrot.lane.b32.xlu0 %v329, 1
  %v391 = vpop.permute.xlu0 %390
  %392 = vrot.lane.b32.xlu0 %v330, 1
  %v393 = vpop.permute.xlu0 %392
  %394 = vrot.lane.b32.xlu0 %v331, 1
  %v395 = vpop.permute.xlu0 %394
  %396 = vrot.lane.b32.xlu0 %v332, 1
  %v397 = vpop.permute.xlu0 %396
  %398 = vrot.lane.b32.xlu0 %v333, 1
  %v399 = vpop.permute.xlu0 %398
  %400 = vrot.lane.b32.xlu0 %v334, 1
  %v401 = vpop.permute.xlu0 %400
  %v402 = vsel %vm93, %v399, %v401
  %v403 = vsel %vm93, %v397, %v399
  %v404 = vsel %vm93, %v395, %v397
  %v405 = vsel %vm93, %v393, %v395
  %v406 = vsel %vm93, %v391, %v393
  %v407 = vsel %vm93, %v401, %v391
  %408 = vrot.lane.b32.xlu0 %v329, 127
  %v409 = vpop.permute.xlu0 %408
  %410 = vrot.lane.b32.xlu0 %v330, 127
  %v411 = vpop.permute.xlu0 %410
  %412 = vrot.lane.b32.xlu0 %v331, 127
  %v413 = vpop.permute.xlu0 %412
  %414 = vrot.lane.b32.xlu0 %v332, 127
  %v415 = vpop.permute.xlu0 %414
  %416 = vrot.lane.b32.xlu0 %v333, 127
  %v417 = vpop.permute.xlu0 %416
  %418 = vrot.lane.b32.xlu0 %v334, 127
  %v419 = vpop.permute.xlu0 %418
  %v420 = vsel %vm112, %v417, %v419
  %v421 = vsel %vm112, %v415, %v417
  %v422 = vsel %vm112, %v413, %v415
  %v423 = vsel %vm112, %v411, %v413
  %v424 = vsel %vm112, %v409, %v411
  %v425 = vsel %vm112, %v419, %v409
  %426 = vrot.lane.b32.xlu0 %v329, 111
  %v427 = vpop.permute.xlu0 %426
  %428 = vrot.lane.b32.xlu0 %v330, 111
  %v429 = vpop.permute.xlu0 %428
  %430 = vrot.lane.b32.xlu0 %v331, 111
  %v431 = vpop.permute.xlu0 %430
  %432 = vrot.lane.b32.xlu0 %v332, 111
  %v433 = vpop.permute.xlu0 %432
  %434 = vrot.lane.b32.xlu0 %v333, 111
  %v435 = vpop.permute.xlu0 %434
  %436 = vrot.lane.b32.xlu0 %v334, 111
  %v437 = vpop.permute.xlu0 %436
  %v438 = vsel %vm131, %v435, %v437
  %v439 = vsel %vm131, %v433, %v435
  %v440 = vsel %vm131, %v431, %v433
  %v441 = vsel %vm131, %v429, %v431
  %v442 = vsel %vm131, %v427, %v429
  %v443 = vsel %vm131, %v437, %v427
  %444 = vrot.lane.b32.xlu0 %v329, 110
  %v445 = vpop.permute.xlu0 %444
  %446 = vrot.lane.b32.xlu0 %v330, 110
  %v447 = vpop.permute.xlu0 %446
  %448 = vrot.lane.b32.xlu0 %v331, 110
  %v449 = vpop.permute.xlu0 %448
  %450 = vrot.lane.b32.xlu0 %v332, 110
  %v451 = vpop.permute.xlu0 %450
  %452 = vrot.lane.b32.xlu0 %v333, 110
  %v453 = vpop.permute.xlu0 %452
  %454 = vrot.lane.b32.xlu0 %v334, 110
  %v455 = vpop.permute.xlu0 %454
  %v456 = vsel %vm150, %v453, %v455
  %v457 = vsel %vm150, %v451, %v453
  %v458 = vsel %vm150, %v449, %v451
  %v459 = vsel %vm150, %v447, %v449
  %v460 = vsel %vm150, %v445, %v447
  %v461 = vsel %vm150, %v455, %v445
  %462 = vrot.lane.b32.xlu0 %v329, 109
  %v463 = vpop.permute.xlu0 %462
  %464 = vrot.lane.b32.xlu0 %v330, 109
  %v465 = vpop.permute.xlu0 %464
  %466 = vrot.lane.b32.xlu0 %v331, 109
  %v467 = vpop.permute.xlu0 %466
  %468 = vrot.lane.b32.xlu0 %v332, 109
  %v469 = vpop.permute.xlu0 %468
  %470 = vrot.lane.b32.xlu0 %v333, 109
  %v471 = vpop.permute.xlu0 %470
  %472 = vrot.lane.b32.xlu0 %v334, 109
  %v473 = vpop.permute.xlu0 %472
  %v474 = vsel %vm169, %v471, %v473
  %v475 = vsel %vm169, %v469, %v471
  %v476 = vsel %vm169, %v467, %v469
  %v477 = vsel %vm169, %v465, %v467
  %v478 = vsel %vm169, %v463, %v465
  %v479 = vsel %vm169, %v473, %v463
  %v481 = vsel %vm176, %v335, 0
  %483 = vmatpush.msra.mxu0 0.0
  %484 = vmatpush.msra.mxu0 0.0
  %485 = vmatpush.msra.mxu0 0.0
  %486 = vmatpush.msra.mxu0 0.0
  %487 = vmatpush.msra.mxu0 0.0
  %488 = vmatpush.msra.mxu0 0.0
  %489 = vmatpush.msra.mxu0 %v182
  %490 = vmatpush.msra.mxu0 %v478
  %491 = vmatpush.msra.mxu0 %v460
  %492 = vmatpush.msra.mxu0 %v442
  %493 = vmatpush.msra.mxu0 %v424
  %494 = vmatpush.msra.mxu0 %v329
  %495 = vmatpush.msra.mxu0 %v407
  %496 = vmatpush.msra.mxu0 %v389
  %497 = vmatpush.msra.mxu0 %v371
  %498 = vmatpush.msra.mxu0 %v353
  %499 = vmatmul.f32.gmra.mxu0 %v481
  %v500 = vpop.f32.mrf.mxu0
  %v501 = vadd.f32 0.0, %v500
  %502 = vdwg.mxu0
  %503 = vmatpush.msra.mxu0 0.0
  %504 = vmatpush.msra.mxu0 0.0
  %505 = vmatpush.msra.mxu0 0.0
  %506 = vmatpush.msra.mxu0 0.0
  %507 = vmatpush.msra.mxu0 0.0
  %508 = vmatpush.msra.mxu0 0.0
  %509 = vmatpush.msra.mxu0 %v182
  %510 = vmatpush.msra.mxu0 %v477
  %511 = vmatpush.msra.mxu0 %v459
  %512 = vmatpush.msra.mxu0 %v441
  %513 = vmatpush.msra.mxu0 %v423
  %514 = vmatpush.msra.mxu0 %v330
  %515 = vmatpush.msra.mxu0 %v406
  %516 = vmatpush.msra.mxu0 %v388
  %517 = vmatpush.msra.mxu0 %v370
  %518 = vmatpush.msra.mxu0 %v352
  %519 = vmatmul.f32.gmra.mxu0 %v481
  %v520 = vpop.f32.mrf.mxu0
  %v521 = vadd.f32 0.0, %v520
  %522 = vdwg.mxu0
  %523 = vmatpush.msra.mxu0 0.0
  %524 = vmatpush.msra.mxu0 0.0
  %525 = vmatpush.msra.mxu0 0.0
  %526 = vmatpush.msra.mxu0 0.0
  %527 = vmatpush.msra.mxu0 0.0
  %528 = vmatpush.msra.mxu0 0.0
  %529 = vmatpush.msra.mxu0 %v182
  %530 = vmatpush.msra.mxu0 %v476
  %531 = vmatpush.msra.mxu0 %v458
  %532 = vmatpush.msra.mxu0 %v440
  %533 = vmatpush.msra.mxu0 %v422
  %534 = vmatpush.msra.mxu0 %v331
  %535 = vmatpush.msra.mxu0 %v405
  %536 = vmatpush.msra.mxu0 %v387
  %537 = vmatpush.msra.mxu0 %v369
  %538 = vmatpush.msra.mxu0 %v351
  %539 = vmatmul.f32.gmra.mxu0 %v481
  %v540 = vpop.f32.mrf.mxu0
  %v541 = vadd.f32 0.0, %v540
  %542 = vdwg.mxu0
  %543 = vmatpush.msra.mxu0 0.0
  %544 = vmatpush.msra.mxu0 0.0
  %545 = vmatpush.msra.mxu0 0.0
  %546 = vmatpush.msra.mxu0 0.0
  %547 = vmatpush.msra.mxu0 0.0
  %548 = vmatpush.msra.mxu0 0.0
  %549 = vmatpush.msra.mxu0 %v182
  %550 = vmatpush.msra.mxu0 %v475
  %551 = vmatpush.msra.mxu0 %v457
  %552 = vmatpush.msra.mxu0 %v439
  %553 = vmatpush.msra.mxu0 %v421
  %554 = vmatpush.msra.mxu0 %v332
  %555 = vmatpush.msra.mxu0 %v404
  %556 = vmatpush.msra.mxu0 %v386
  %557 = vmatpush.msra.mxu0 %v368
  %558 = vmatpush.msra.mxu0 %v350
  %559 = vmatmul.f32.gmra.mxu0 %v481
  %v560 = vpop.f32.mrf.mxu0
  %v561 = vadd.f32 0.0, %v560
  %562 = vdwg.mxu0
  %563 = vmatpush.msra.mxu0 0.0
  %564 = vmatpush.msra.mxu0 0.0
  %565 = vmatpush.msra.mxu0 0.0
  %566 = vmatpush.msra.mxu0 0.0
  %567 = vmatpush.msra.mxu0 0.0
  %568 = vmatpush.msra.mxu0 0.0
  %569 = vmatpush.msra.mxu0 %v182
  %570 = vmatpush.msra.mxu0 %v474
  %571 = vmatpush.msra.mxu0 %v456
  %572 = vmatpush.msra.mxu0 %v438
  %573 = vmatpush.msra.mxu0 %v420
  %574 = vmatpush.msra.mxu0 %v333
  %575 = vmatpush.msra.mxu0 %v403
  %576 = vmatpush.msra.mxu0 %v385
  %577 = vmatpush.msra.mxu0 %v367
  %578 = vmatpush.msra.mxu0 %v349
  %579 = vmatmul.f32.gmra.mxu0 %v481
  %v580 = vpop.f32.mrf.mxu0
  %v581 = vadd.f32 0.0, %v580
  %582 = vdwg.mxu0
  %583 = vmatpush.msra.mxu0 0.0
  %584 = vmatpush.msra.mxu0 0.0
  %585 = vmatpush.msra.mxu0 0.0
  %586 = vmatpush.msra.mxu0 0.0
  %587 = vmatpush.msra.mxu0 0.0
  %588 = vmatpush.msra.mxu0 0.0
  %589 = vmatpush.msra.mxu0 %v182
  %590 = vmatpush.msra.mxu0 %v479
  %591 = vmatpush.msra.mxu0 %v461
  %592 = vmatpush.msra.mxu0 %v443
  %593 = vmatpush.msra.mxu0 %v425
  %594 = vmatpush.msra.mxu0 %v334
  %595 = vmatpush.msra.mxu0 %v402
  %596 = vmatpush.msra.mxu0 %v384
  %597 = vmatpush.msra.mxu0 %v366
  %598 = vmatpush.msra.mxu0 %v348
  %599 = vmatmul.f32.gmra.mxu0 %v481
  %v600 = vpop.f32.mrf.mxu0
  %v601 = vadd.f32 0.0, %v600
  %602 = vdwg.mxu0
  %v603 = vmul.f32 %v501, 0.1
  %v604 = vmul.f32 %v521, 0.1
  %v605 = vmul.f32 %v541, 0.1
  %v606 = vmul.f32 %v561, 0.1
  %v607 = vmul.f32 %v581, 0.1
  %v608 = vmul.f32 %v601, 0.1
  %v609 = vmax.f32 %v501, %v603
  %v610 = vmax.f32 %v521, %v604
  %v611 = vmax.f32 %v541, %v605
  %v612 = vmax.f32 %v561, %v606
  %v613 = vmax.f32 %v581, %v607
  %v614 = vmax.f32 %v601, %v608
  %v615 = vxor.u32 %v609, 2147483648
  %v616 = vxor.u32 %v610, 2147483648
  %v617 = vxor.u32 %v611, 2147483648
  %v618 = vxor.u32 %v612, 2147483648
  %v619 = vxor.u32 %v613, 2147483648
  %v620 = vxor.u32 %v614, 2147483648
  %v621 = vmul.f32 %v615, 1.442695
  %v622 = vpow.pop %v621
  %v623 = vmul.f32 %v616, 1.442695
  %v624 = vpow.pop %v623
  %v625 = vmul.f32 %v617, 1.442695
  %v626 = vpow.pop %v625
  %v627 = vmul.f32 %v618, 1.442695
  %v628 = vpow.pop %v627
  %v629 = vmul.f32 %v619, 1.442695
  %v630 = vpow.pop %v629
  %v631 = vmul.f32 %v620, 1.442695
  %v632 = vpow.pop %v631
  %v633 = vadd.f32 %v622, 1.0
  %v634 = vadd.f32 %v624, 1.0
  %v635 = vadd.f32 %v626, 1.0
  %v636 = vadd.f32 %v628, 1.0
  %v637 = vadd.f32 %v630, 1.0
  %v638 = vadd.f32 %v632, 1.0
  %v639 = vrcp.pop %v633
  %v640 = vmul.f32 %v633, %v639
  %v641 = vsub.f32 1.0, %v640
  %v642 = vmul.f32 %v639, %v641
  %v643 = vadd.f32 %v639, %v642
  %vm644 = vweird.f32 %v633
  %vm645 = vweird.f32 %v639
  %vm646 = vmor %vm644, %vm645
  %v647 = vsel %vm646, %v639, %v643
  %v648 = vand.u32 2147483647, %v633
  %vm649 = vcmp.eq.f32.partialorder %v648, 8.507059e+37
  %v650 = vand.u32 %v633, 2147483648
  %v651 = vor.u32 1.1754944e-38, %v650
  %v652 = vsel %vm649, %v651, %v647
  %v653 = vmul.f32 1.0, %v652
  %v654 = vrcp.pop %v634
  %v655 = vmul.f32 %v634, %v654
  %v656 = vsub.f32 1.0, %v655
  %v657 = vmul.f32 %v654, %v656
  %v658 = vadd.f32 %v654, %v657
  %vm659 = vweird.f32 %v634
  %vm660 = vweird.f32 %v654
  %vm661 = vmor %vm659, %vm660
  %v662 = vsel %vm661, %v654, %v658
  %v663 = vand.u32 2147483647, %v634
  %vm664 = vcmp.eq.f32.partialorder %v663, 8.507059e+37
  %v665 = vand.u32 %v634, 2147483648
  %v666 = vor.u32 1.1754944e-38, %v665
  %v667 = vsel %vm664, %v666, %v662
  %v668 = vmul.f32 1.0, %v667
  %v669 = vrcp.pop %v635
  %v670 = vmul.f32 %v635, %v669
  %v671 = vsub.f32 1.0, %v670
  %v672 = vmul.f32 %v669, %v671
  %v673 = vadd.f32 %v669, %v672
  %vm674 = vweird.f32 %v635
  %vm675 = vweird.f32 %v669
  %vm676 = vmor %vm674, %vm675
  %v677 = vsel %vm676, %v669, %v673
  %v678 = vand.u32 2147483647, %v635
  %vm679 = vcmp.eq.f32.partialorder %v678, 8.507059e+37
  %v680 = vand.u32 %v635, 2147483648
  %v681 = vor.u32 1.1754944e-38, %v680
  %v682 = vsel %vm679, %v681, %v677
  %v683 = vmul.f32 1.0, %v682
  %v684 = vrcp.pop %v636
  %v685 = vmul.f32 %v636, %v684
  %v686 = vsub.f32 1.0, %v685
  %v687 = vmul.f32 %v684, %v686
  %v688 = vadd.f32 %v684, %v687
  %vm689 = vweird.f32 %v636
  %vm690 = vweird.f32 %v684
  %vm691 = vmor %vm689, %vm690
  %v692 = vsel %vm691, %v684, %v688
  %v693 = vand.u32 2147483647, %v636
  %vm694 = vcmp.eq.f32.partialorder %v693, 8.507059e+37
  %v695 = vand.u32 %v636, 2147483648
  %v696 = vor.u32 1.1754944e-38, %v695
  %v697 = vsel %vm694, %v696, %v692
  %v698 = vmul.f32 1.0, %v697
  %v699 = vrcp.pop %v637
  %v700 = vmul.f32 %v637, %v699
  %v701 = vsub.f32 1.0, %v700
  %v702 = vmul.f32 %v699, %v701
  %v703 = vadd.f32 %v699, %v702
  %vm704 = vweird.f32 %v637
  %vm705 = vweird.f32 %v699
  %vm706 = vmor %vm704, %vm705
  %v707 = vsel %vm706, %v699, %v703
  %v708 = vand.u32 2147483647, %v637
  %vm709 = vcmp.eq.f32.partialorder %v708, 8.507059e+37
  %v710 = vand.u32 %v637, 2147483648
  %v711 = vor.u32 1.1754944e-38, %v710
  %v712 = vsel %vm709, %v711, %v707
  %v713 = vmul.f32 1.0, %v712
  %v714 = vrcp.pop %v638
  %v715 = vmul.f32 %v638, %v714
  %v716 = vsub.f32 1.0, %v715
  %v717 = vmul.f32 %v714, %v716
  %v718 = vadd.f32 %v714, %v717
  %vm719 = vweird.f32 %v638
  %vm720 = vweird.f32 %v714
  %vm721 = vmor %vm719, %vm720
  %v722 = vsel %vm721, %v714, %v718
  %v723 = vand.u32 2147483647, %v638
  %vm724 = vcmp.eq.f32.partialorder %v723, 8.507059e+37
  %v725 = vand.u32 %v638, 2147483648
  %v726 = vor.u32 1.1754944e-38, %v725
  %v727 = vsel %vm724, %v726, %v722
  %v728 = vmul.f32 1.0, %v727
  %v729 = vadd.f32 %v653, 1.0
  %v730 = vadd.f32 %v668, 1.0
  %v731 = vadd.f32 %v683, 1.0
  %v732 = vadd.f32 %v698, 1.0
  %v733 = vadd.f32 %v713, 1.0
  %v734 = vadd.f32 %v728, 1.0
  %v735 = vmul.f32 %v329, %v729
  %v736 = vmul.f32 %v330, %v730
  %v737 = vmul.f32 %v331, %v731
  %v738 = vmul.f32 %v332, %v732
  %v739 = vmul.f32 %v333, %v733
  %v740 = vmul.f32 %v334, %v734
  %v741 = vld [vmem:[%s2 + $0x10] sm:$0xff]
  %v742 = vld [vmem:[%s2 + $0x18] sm:$0xff]
  %743 = vrot.lane.b32.xlu0 %v735, 19
  %v744 = vpop.permute.xlu0 %743
  %745 = vrot.lane.b32.xlu0 %v736, 19
  %v746 = vpop.permute.xlu0 %745
  %747 = vrot.lane.b32.xlu0 %v737, 19
  %v748 = vpop.permute.xlu0 %747
  %749 = vrot.lane.b32.xlu0 %v738, 19
  %v750 = vpop.permute.xlu0 %749
  %751 = vrot.lane.b32.xlu0 %v739, 19
  %v752 = vpop.permute.xlu0 %751
  %753 = vrot.lane.b32.xlu0 %v740, 19
  %v754 = vpop.permute.xlu0 %753
  %v755 = vsel %vm36, %v752, %v754
  %v756 = vsel %vm36, %v750, %v752
  %v757 = vsel %vm36, %v748, %v750
  %v758 = vsel %vm36, %v746, %v748
  %v759 = vsel %vm36, %v744, %v746
  %v760 = vsel %vm36, %v754, %v744
  %761 = vrot.lane.b32.xlu0 %v735, 18
  %v762 = vpop.permute.xlu0 %761
  %763 = vrot.lane.b32.xlu0 %v736, 18
  %v764 = vpop.permute.xlu0 %763
  %765 = vrot.lane.b32.xlu0 %v737, 18
  %v766 = vpop.permute.xlu0 %765
  %767 = vrot.lane.b32.xlu0 %v738, 18
  %v768 = vpop.permute.xlu0 %767
  %769 = vrot.lane.b32.xlu0 %v739, 18
  %v770 = vpop.permute.xlu0 %769
  %771 = vrot.lane.b32.xlu0 %v740, 18
  %v772 = vpop.permute.xlu0 %771
  %v773 = vsel %vm55, %v770, %v772
  %v774 = vsel %vm55, %v768, %v770
  %v775 = vsel %vm55, %v766, %v768
  %v776 = vsel %vm55, %v764, %v766
  %v777 = vsel %vm55, %v762, %v764
  %v778 = vsel %vm55, %v772, %v762
  %779 = vrot.lane.b32.xlu0 %v735, 17
  %v780 = vpop.permute.xlu0 %779
  %781 = vrot.lane.b32.xlu0 %v736, 17
  %v782 = vpop.permute.xlu0 %781
  %783 = vrot.lane.b32.xlu0 %v737, 17
  %v784 = vpop.permute.xlu0 %783
  %785 = vrot.lane.b32.xlu0 %v738, 17
  %v786 = vpop.permute.xlu0 %785
  %787 = vrot.lane.b32.xlu0 %v739, 17
  %v788 = vpop.permute.xlu0 %787
  %789 = vrot.lane.b32.xlu0 %v740, 17
  %v790 = vpop.permute.xlu0 %789
  %v791 = vsel %vm74, %v788, %v790
  %v792 = vsel %vm74, %v786, %v788
  %v793 = vsel %vm74, %v784, %v786
  %v794 = vsel %vm74, %v782, %v784
  %v795 = vsel %vm74, %v780, %v782
  %v796 = vsel %vm74, %v790, %v780
  %797 = vrot.lane.b32.xlu0 %v735, 1
  %v798 = vpop.permute.xlu0 %797
  %799 = vrot.lane.b32.xlu0 %v736, 1
  %v800 = vpop.permute.xlu0 %799
  %801 = vrot.lane.b32.xlu0 %v737, 1
  %v802 = vpop.permute.xlu0 %801
  %803 = vrot.lane.b32.xlu0 %v738, 1
  %v804 = vpop.permute.xlu0 %803
  %805 = vrot.lane.b32.xlu0 %v739, 1
  %v806 = vpop.permute.xlu0 %805
  %807 = vrot.lane.b32.xlu0 %v740, 1
  %v808 = vpop.permute.xlu0 %807
  %v809 = vsel %vm93, %v806, %v808
  %v810 = vsel %vm93, %v804, %v806
  %v811 = vsel %vm93, %v802, %v804
  %v812 = vsel %vm93, %v800, %v802
  %v813 = vsel %vm93, %v798, %v800
  %v814 = vsel %vm93, %v808, %v798
  %815 = vrot.lane.b32.xlu0 %v735, 127
  %v816 = vpop.permute.xlu0 %815
  %817 = vrot.lane.b32.xlu0 %v736, 127
  %v818 = vpop.permute.xlu0 %817
  %819 = vrot.lane.b32.xlu0 %v737, 127
  %v820 = vpop.permute.xlu0 %819
  %821 = vrot.lane.b32.xlu0 %v738, 127
  %v822 = vpop.permute.xlu0 %821
  %823 = vrot.lane.b32.xlu0 %v739, 127
  %v824 = vpop.permute.xlu0 %823
  %825 = vrot.lane.b32.xlu0 %v740, 127
  %v826 = vpop.permute.xlu0 %825
  %v827 = vsel %vm112, %v824, %v826
  %v828 = vsel %vm112, %v822, %v824
  %v829 = vsel %vm112, %v820, %v822
  %v830 = vsel %vm112, %v818, %v820
  %v831 = vsel %vm112, %v816, %v818
  %v832 = vsel %vm112, %v826, %v816
  %833 = vrot.lane.b32.xlu0 %v735, 111
  %v834 = vpop.permute.xlu0 %833
  %835 = vrot.lane.b32.xlu0 %v736, 111
  %v836 = vpop.permute.xlu0 %835
  %837 = vrot.lane.b32.xlu0 %v737, 111
  %v838 = vpop.permute.xlu0 %837
  %839 = vrot.lane.b32.xlu0 %v738, 111
  %v840 = vpop.permute.xlu0 %839
  %841 = vrot.lane.b32.xlu0 %v739, 111
  %v842 = vpop.permute.xlu0 %841
  %843 = vrot.lane.b32.xlu0 %v740, 111
  %v844 = vpop.permute.xlu0 %843
  %v845 = vsel %vm131, %v842, %v844
  %v846 = vsel %vm131, %v840, %v842
  %v847 = vsel %vm131, %v838, %v840
  %v848 = vsel %vm131, %v836, %v838
  %v849 = vsel %vm131, %v834, %v836
  %v850 = vsel %vm131, %v844, %v834
  %851 = vrot.lane.b32.xlu0 %v735, 110
  %v852 = vpop.permute.xlu0 %851
  %853 = vrot.lane.b32.xlu0 %v736, 110
  %v854 = vpop.permute.xlu0 %853
  %855 = vrot.lane.b32.xlu0 %v737, 110
  %v856 = vpop.permute.xlu0 %855
  %857 = vrot.lane.b32.xlu0 %v738, 110
  %v858 = vpop.permute.xlu0 %857
  %859 = vrot.lane.b32.xlu0 %v739, 110
  %v860 = vpop.permute.xlu0 %859
  %861 = vrot.lane.b32.xlu0 %v740, 110
  %v862 = vpop.permute.xlu0 %861
  %v863 = vsel %vm150, %v860, %v862
  %v864 = vsel %vm150, %v858, %v860
  %v865 = vsel %vm150, %v856, %v858
  %v866 = vsel %vm150, %v854, %v856
  %v867 = vsel %vm150, %v852, %v854
  %v868 = vsel %vm150, %v862, %v852
  %869 = vrot.lane.b32.xlu0 %v735, 109
  %v870 = vpop.permute.xlu0 %869
  %871 = vrot.lane.b32.xlu0 %v736, 109
  %v872 = vpop.permute.xlu0 %871
  %873 = vrot.lane.b32.xlu0 %v737, 109
  %v874 = vpop.permute.xlu0 %873
  %875 = vrot.lane.b32.xlu0 %v738, 109
  %v876 = vpop.permute.xlu0 %875
  %877 = vrot.lane.b32.xlu0 %v739, 109
  %v878 = vpop.permute.xlu0 %877
  %879 = vrot.lane.b32.xlu0 %v740, 109
  %v880 = vpop.permute.xlu0 %879
  %v881 = vsel %vm169, %v878, %v880
  %v882 = vsel %vm169, %v876, %v878
  %v883 = vsel %vm169, %v874, %v876
  %v884 = vsel %vm169, %v872, %v874
  %v885 = vsel %vm169, %v870, %v872
  %v886 = vsel %vm169, %v880, %v870
  %v888 = vsel %vm176, %v741, 0
  %v891 = vsel %vm176, %v742, 0
  %893 = vmatpush.msra.mxu0 0.0
  %894 = vmatpush.msra.mxu0 0.0
  %895 = vmatpush.msra.mxu0 0.0
  %896 = vmatpush.msra.mxu0 0.0
  %897 = vmatpush.msra.mxu0 0.0
  %898 = vmatpush.msra.mxu0 0.0
  %899 = vmatpush.msra.mxu0 %v182
  %900 = vmatpush.msra.mxu0 %v885
  %901 = vmatpush.msra.mxu0 %v867
  %902 = vmatpush.msra.mxu0 %v849
  %903 = vmatpush.msra.mxu0 %v831
  %904 = vmatpush.msra.mxu0 %v735
  %905 = vmatpush.msra.mxu0 %v814
  %906 = vmatpush.msra.mxu0 %v796
  %907 = vmatpush.msra.mxu0 %v778
  %908 = vmatpush.msra.mxu0 %v760
  %909 = vmatmul.f32.gmra.mxu0 %v888
  %v910 = vpop.f32.mrf.mxu0
  %v911 = vadd.f32 0.0, %v910
  %912 = vmatmul.f32.gmra.mxu0 %v891
  %v913 = vpop.f32.mrf.mxu0
  %v914 = vadd.f32 0.0, %v913
  %915 = vdwg.mxu0
  %916 = vmatpush.msra.mxu0 0.0
  %917 = vmatpush.msra.mxu0 0.0
  %918 = vmatpush.msra.mxu0 0.0
  %919 = vmatpush.msra.mxu0 0.0
  %920 = vmatpush.msra.mxu0 0.0
  %921 = vmatpush.msra.mxu0 0.0
  %922 = vmatpush.msra.mxu0 %v182
  %923 = vmatpush.msra.mxu0 %v884
  %924 = vmatpush.msra.mxu0 %v866
  %925 = vmatpush.msra.mxu0 %v848
  %926 = vmatpush.msra.mxu0 %v830
  %927 = vmatpush.msra.mxu0 %v736
  %928 = vmatpush.msra.mxu0 %v813
  %929 = vmatpush.msra.mxu0 %v795
  %930 = vmatpush.msra.mxu0 %v777
  %931 = vmatpush.msra.mxu0 %v759
  %932 = vmatmul.f32.gmra.mxu0 %v888
  %v933 = vpop.f32.mrf.mxu0
  %v934 = vadd.f32 0.0, %v933
  %935 = vmatmul.f32.gmra.mxu0 %v891
  %v936 = vpop.f32.mrf.mxu0
  %v937 = vadd.f32 0.0, %v936
  %938 = vdwg.mxu0
  %939 = vmatpush.msra.mxu0 0.0
  %940 = vmatpush.msra.mxu0 0.0
  %941 = vmatpush.msra.mxu0 0.0
  %942 = vmatpush.msra.mxu0 0.0
  %943 = vmatpush.msra.mxu0 0.0
  %944 = vmatpush.msra.mxu0 0.0
  %945 = vmatpush.msra.mxu0 %v182
  %946 = vmatpush.msra.mxu0 %v883
  %947 = vmatpush.msra.mxu0 %v865
  %948 = vmatpush.msra.mxu0 %v847
  %949 = vmatpush.msra.mxu0 %v829
  %950 = vmatpush.msra.mxu0 %v737
  %951 = vmatpush.msra.mxu0 %v812
  %952 = vmatpush.msra.mxu0 %v794
  %953 = vmatpush.msra.mxu0 %v776
  %954 = vmatpush.msra.mxu0 %v758
  %955 = vmatmul.f32.gmra.mxu0 %v888
  %v956 = vpop.f32.mrf.mxu0
  %v957 = vadd.f32 0.0, %v956
  %958 = vmatmul.f32.gmra.mxu0 %v891
  %v959 = vpop.f32.mrf.mxu0
  %v960 = vadd.f32 0.0, %v959
  %961 = vdwg.mxu0
  %962 = vmatpush.msra.mxu0 0.0
  %963 = vmatpush.msra.mxu0 0.0
  %964 = vmatpush.msra.mxu0 0.0
  %965 = vmatpush.msra.mxu0 0.0
  %966 = vmatpush.msra.mxu0 0.0
  %967 = vmatpush.msra.mxu0 0.0
  %968 = vmatpush.msra.mxu0 %v182
  %969 = vmatpush.msra.mxu0 %v882
  %970 = vmatpush.msra.mxu0 %v864
  %971 = vmatpush.msra.mxu0 %v846
  %972 = vmatpush.msra.mxu0 %v828
  %973 = vmatpush.msra.mxu0 %v738
  %974 = vmatpush.msra.mxu0 %v811
  %975 = vmatpush.msra.mxu0 %v793
  %976 = vmatpush.msra.mxu0 %v775
  %977 = vmatpush.msra.mxu0 %v757
  %978 = vmatmul.f32.gmra.mxu0 %v888
  %v979 = vpop.f32.mrf.mxu0
  %v980 = vadd.f32 0.0, %v979
  %981 = vmatmul.f32.gmra.mxu0 %v891
  %v982 = vpop.f32.mrf.mxu0
  %v983 = vadd.f32 0.0, %v982
  %984 = vdwg.mxu0
  %985 = vmatpush.msra.mxu0 0.0
  %986 = vmatpush.msra.mxu0 0.0
  %987 = vmatpush.msra.mxu0 0.0
  %988 = vmatpush.msra.mxu0 0.0
  %989 = vmatpush.msra.mxu0 0.0
  %990 = vmatpush.msra.mxu0 0.0
  %991 = vmatpush.msra.mxu0 %v182
  %992 = vmatpush.msra.mxu0 %v881
  %993 = vmatpush.msra.mxu0 %v863
  %994 = vmatpush.msra.mxu0 %v845
  %995 = vmatpush.msra.mxu0 %v827
  %996 = vmatpush.msra.mxu0 %v739
  %997 = vmatpush.msra.mxu0 %v810
  %998 = vmatpush.msra.mxu0 %v792
  %999 = vmatpush.msra.mxu0 %v774
  %1000 = vmatpush.msra.mxu0 %v756
  %1001 = vmatmul.f32.gmra.mxu0 %v888
  %v1002 = vpop.f32.mrf.mxu0
  %v1003 = vadd.f32 0.0, %v1002
  %1004 = vmatmul.f32.gmra.mxu0 %v891
  %v1005 = vpop.f32.mrf.mxu0
  %v1006 = vadd.f32 0.0, %v1005
  %1007 = vdwg.mxu0
  %1008 = vmatpush.msra.mxu0 0.0
  %1009 = vmatpush.msra.mxu0 0.0
  %1010 = vmatpush.msra.mxu0 0.0
  %1011 = vmatpush.msra.mxu0 0.0
  %1012 = vmatpush.msra.mxu0 0.0
  %1013 = vmatpush.msra.mxu0 0.0
  %1014 = vmatpush.msra.mxu0 %v182
  %1015 = vmatpush.msra.mxu0 %v886
  %1016 = vmatpush.msra.mxu0 %v868
  %1017 = vmatpush.msra.mxu0 %v850
  %1018 = vmatpush.msra.mxu0 %v832
  %1019 = vmatpush.msra.mxu0 %v740
  %1020 = vmatpush.msra.mxu0 %v809
  %1021 = vmatpush.msra.mxu0 %v791
  %1022 = vmatpush.msra.mxu0 %v773
  %1023 = vmatpush.msra.mxu0 %v755
  %1024 = vmatmul.f32.gmra.mxu0 %v888
  %v1025 = vpop.f32.mrf.mxu0
  %v1026 = vadd.f32 0.0, %v1025
  %1027 = vmatmul.f32.gmra.mxu0 %v891
  %v1028 = vpop.f32.mrf.mxu0
  %v1029 = vadd.f32 0.0, %v1028
  %1030 = vdwg.mxu0
  %v1031 = vmul.f32 %v911, 0.1
  %v1032 = vmul.f32 %v934, 0.1
  %v1033 = vmul.f32 %v957, 0.1
  %v1034 = vmul.f32 %v980, 0.1
  %v1035 = vmul.f32 %v1003, 0.1
  %v1036 = vmul.f32 %v1026, 0.1
  %v1037 = vmul.f32 %v914, 0.1
  %v1038 = vmul.f32 %v937, 0.1
  %v1039 = vmul.f32 %v960, 0.1
  %v1040 = vmul.f32 %v983, 0.1
  %v1041 = vmul.f32 %v1006, 0.1
  %v1042 = vmul.f32 %v1029, 0.1
  %v1043 = vmax.f32 %v911, %v1031
  %v1044 = vmax.f32 %v934, %v1032
  %v1045 = vmax.f32 %v957, %v1033
  %v1046 = vmax.f32 %v980, %v1034
  %v1047 = vmax.f32 %v1003, %v1035
  %v1048 = vmax.f32 %v1026, %v1036
  %v1049 = vmax.f32 %v914, %v1037
  %v1050 = vmax.f32 %v937, %v1038
  %v1051 = vmax.f32 %v960, %v1039
  %v1052 = vmax.f32 %v983, %v1040
  %v1053 = vmax.f32 %v1006, %v1041
  %v1054 = vmax.f32 %v1029, %v1042
  %1055 = vst [vmem:[%s3] sm:$0xff] %v1043
  %1056 = vst [vmem:[%s3 + $0x8] sm:$0xff] %v1044
  %1057 = vst [vmem:[%s3 + $0x10] sm:$0xff] %v1045
  %1058 = vst [vmem:[%s3 + $0x18] sm:$0xff] %v1046
  %1059 = vst [vmem:[%s3 + $0x20] sm:$0xff] %v1047
  %1060 = vst [vmem:[%s3 + $0x28] sm:$0xff] %v1048
  %1061 = vst [vmem:[%s3 + $0x30] sm:$0xff] %v1049
  %1062 = vst [vmem:[%s3 + $0x38] sm:$0xff] %v1050
  %1063 = vst [vmem:[%s3 + $0x40] sm:$0xff] %v1051
  %1064 = vst [vmem:[%s3 + $0x48] sm:$0xff] %v1052
  %1065 = vst [vmem:[%s3 + $0x50] sm:$0xff] %v1053
  %1066 = vst [vmem:[%s3 + $0x58] sm:$0xff] %v1054
  // Predicated region
  $region14: #{_forward.1} parent=0 // pred_check
    _
  $region15: #{_forward.1} parent=0 // pred_check_branch
    %1068 = sbr.rel (0) target = $region17
  $region16: #{_forward.1} parent=0 // pred_region
    _
  $region17: #{_forward.1} parent=0 // pred_fallthru
    _
  // Predicated region
  $region18: #{_forward.1} parent=0 // pred_check
    _
  $region19: #{_forward.1} parent=0 // pred_check_branch
    %1070 = sbr.rel (0) target = $region21
  $region20: #{_forward.1} parent=0 // pred_region
    _
  $region21: #{_forward.1} parent=0 // pred_fallthru
    _

</llo_original>
